<compile_context>
chip_gen: v7x
topology: tpu7x:2x2x1
jax: 0.10.0
libtpu: 0.0.40
codegen_flags: <defaults>
</compile_context>

<pallas_src>
import jax
import jax.numpy as jnp
from jax import lax
from jax.experimental import pallas as pl
from jax.experimental.pallas import tpu as pltpu


def _round_up(n, m):
    return ((n + m - 1) // m) * m


def _hash_u32(rows, cols, seed):
    """Counter-based hash -> uint32 pseudo-random bits (pure VPU ops)."""
    x = rows * jnp.uint32(0x9E3779B9)
    x = x ^ (cols * jnp.uint32(0x85EBCA6B))
    x = x ^ seed
    x = x ^ (x >> 16)
    x = x * jnp.uint32(0x7FEB352D)
    x = x ^ (x >> 15)
    x = x * jnp.uint32(0x846CA68B)
    x = x ^ (x >> 16)
    return x


def _prenet_fused_kernel(seed_ref, x_ref, w_ref, o_ref):
    """Fused Prenet: for each layer  h = dropout(relu(h @ W_l), p=0.5).

    seed_ref : SMEM scalar-prefetch, (1,) int32 -- base dropout seed
    x_ref    : VMEM (TN, P) float32   row tile (feature dim padded to P=128k)
    w_ref    : VMEM (L, P, P) bfloat16  stacked, pre-transposed, zero-padded W
    o_ref    : VMEM (TN, P) float32   final layer output (padded)
    """
    tn = x_ref.shape[0]
    p = w_ref.shape[2]
    num_layers = w_ref.shape[0]

    pid = pl.program_id(0)
    row_base = (pid * tn).astype(jnp.uint32)
    seed_u = seed_ref[0].astype(jnp.uint32)

    # Global (row, col) counters for the dropout hash; reused by every layer.
    rows = lax.broadcasted_iota(jnp.int32, (tn, p), 0).astype(jnp.uint32) + row_base
    cols = lax.broadcasted_iota(jnp.int32, (tn, p), 1).astype(jnp.uint32)

    h = x_ref[...]  # (TN, P) f32
    for layer in range(num_layers):  # static unroll, L is tiny
        # MXU matmul in bf16, f32 accumulation.
        y = jnp.dot(h.astype(jnp.bfloat16), w_ref[layer],
                    preferred_element_type=jnp.float32)
        # Inverted dropout(p=0.5) with ReLU folded into the keep-mask:
        # kept elements get 2*relu(y); dropped or negative elements -> 0.
        layer_salt = jnp.uint32(((layer + 1) * 0x9E3779B1) & 0xFFFFFFFF)
        bits = _hash_u32(rows, cols, seed_u ^ layer_salt)
        keep = ((bits & jnp.uint32(1)) == 0) & (y > 0.0)
        h = jnp.where(keep, y * 2.0, 0.0)

    o_ref[...] = h.astype(o_ref.dtype)


def init_prenet_params(key, input_dimension, layer_sizes, lane_pad=128):
    """Deterministic synthetic weights, packed for the fused kernel.

    Each torch nn.Linear weight (out, in) is generated, transposed to (in, out),
    zero-padded to (P, P) with P = 128-multiple, cast to bf16 and stacked into
    a single (L, P, P) tensor.  Zero padding keeps the math exact.
    """
    input_sizes = [input_dimension] + list(layer_sizes[:-1])
    p = _round_up(max([input_dimension] + list(layer_sizes)), lane_pad)
    packed = jnp.zeros((len(layer_sizes), p, p), dtype=jnp.bfloat16)
    for l, (in_size, out_size) in enumerate(zip(input_sizes, layer_sizes)):
        key, sub = jax.random.split(key)
        limit = (6.0 / (in_size + out_size)) ** 0.5
        w = jax.random.uniform(sub, (out_size, in_size),
                               minval=-limit, maxval=limit, dtype=jnp.float32)
        packed = packed.at[l, :in_size, :out_size].set(
            jnp.transpose(w).astype(jnp.bfloat16))
    return packed, layer_sizes[-1]


def prenet_forward(x, packed_w, out_dim, *, seed=1234, tile_rows=512):
    """x: (B, T, D_in) -> (B, T, out_dim); dropout always on (p=0.5).

    Pass a fresh `seed` per training step to get fresh dropout masks.
    """
    b, t, d_in = x.shape
    n = b * t
    num_layers, p, _ = packed_w.shape

    # Row tiling: multiples of 8 sublanes; pad N up to a whole number of tiles.
    tn = min(tile_rows, _round_up(n, 8))
    n_pad = _round_up(n, tn)

    # Pad rows + feature dim (to lane width P) with zeros.
    xp = jnp.zeros((n_pad, p), jnp.float32).at[:n, :d_in].set(
        x.reshape(n, d_in).astype(jnp.float32))
    seed_arr = jnp.array([seed], dtype=jnp.int32)

    grid = (n_pad // tn,)
    cost = pl.CostEstimate(
        flops=2 * n_pad * p * p * num_layers,
        transcendentals=0,
        bytes_accessed=xp.size * 4 + packed_w.size * 2 + n_pad * p * 4,
    )

    out_pad = pl.pallas_call(
        _prenet_fused_kernel,
        out_shape=jax.ShapeDtypeStruct((n_pad, p), jnp.float32),
        grid_spec=pltpu.PrefetchScalarGridSpec(
            num_scalar_prefetch=1,
            grid=grid,
            in_specs=[
                # Row tile of activations.
                pl.BlockSpec((tn, p), lambda i, s: (i, 0)),
                # Stacked weights: constant index_map -> VMEM-resident.
                pl.BlockSpec((num_layers, p, p), lambda i, s: (0, 0, 0)),
            ],
            out_specs=pl.BlockSpec((tn, p), lambda i, s: (i, 0)),
        ),
        compiler_params=pltpu.CompilerParams(
            dimension_semantics=("parallel",),
            vmem_limit_bytes=32 * 1024 * 1024,
        ),
        cost_estimate=cost,
    )(seed_arr, xp, packed_w)

    return out_pad[:n, :out_dim].reshape(b, t, out_dim)


if __name__ == "__main__":
    key = jax.random.PRNGKey(0)
    k_x, k_w = jax.random.split(key)

    # Small shapes consistent with the module's forward:
    # batch=2, seq=8, input_dimension=32, layer_sizes=(64, 32)
    B, T, D_IN = 2, 8, 32
    LAYER_SIZES = (64, 32)

    x = jax.random.normal(k_x, (B, T, D_IN), dtype=jnp.float32)
    packed_w, out_dim = init_prenet_params(k_w, D_IN, LAYER_SIZES)

    out = prenet_forward(x, packed_w, out_dim, seed=1234)
    out = jax.block_until_ready(out)

    assert out.shape == (B, T, LAYER_SIZES[-1]), out.shape
    assert bool(jnp.all(jnp.isfinite(out)))
    # ReLU + p=0.5 dropout => a large fraction of entries should be exactly 0.
    zero_frac = float(jnp.mean(out == 0.0))
    assert 0.1 < zero_frac < 0.999, zero_frac
    print("KERNEL_OK")
</pallas_src>

<mosaic_0001>
module attributes {stable_mosaic.version = 11 : i64} {
  func.func @_prenet_fused_kernel(%arg0: i32, %arg1: memref<1xi32, #tpu.memory_space<smem>>, %arg2: memref<16x128xf32, #tpu.memory_space<vmem>>, %arg3: memref<2x128x128xbf16, #tpu.memory_space<vmem>>, %arg4: memref<16x128xf32, #tpu.memory_space<vmem>>) attributes {dimension_semantics = [#tpu.dimension_semantics<parallel>], iteration_bounds = array<i64: 1>, scalar_prefetch = 1 : i64, scratch_operands = 0 : i64, tpu.core_type = #tpu.core_type<tc>, window_params = [{transform_indices = @transform_0, window_bounds = array<i64: 16, 128>}, {pipeline_mode = #tpu.pipeline_mode<synchronous>, transform_indices = @transform_1, window_bounds = array<i64: 2, 128, 128>}, {transform_indices = @transform_2, window_bounds = array<i64: 16, 128>}]} {
    %c16_i32 = arith.constant 16 : i32
    %0 = arith.muli %arg0, %c16_i32 : i32
    %c0 = arith.constant 0 : index
    %1 = memref.load %arg1[%c0] : memref<1xi32, #tpu.memory_space<smem>>
    %2 = tpu.iota {dimensions = array<i32: 0>} : vector<16x128xi32>
    %3 = vector.broadcast %0 : i32 to vector<16x128xi32>
    %4 = arith.addi %2, %3 : vector<16x128xi32>
    %5 = tpu.iota {dimensions = array<i32: 1>} : vector<16x128xi32>
    %c0_0 = arith.constant 0 : index
    %c0_1 = arith.constant 0 : index
    %6 = vector.load %arg2[%c0_0, %c0_1] : memref<16x128xf32, #tpu.memory_space<vmem>>, vector<16x128xf32>
    %7 = arith.truncf %6 : vector<16x128xf32> to vector<16x128xbf16>
    %c0_2 = arith.constant 0 : index
    %c0_3 = arith.constant 0 : index
    %c0_4 = arith.constant 0 : index
    %8 = vector.load %arg3[%c0_2, %c0_3, %c0_4] : memref<2x128x128xbf16, #tpu.memory_space<vmem>>, vector<1x128x128xbf16>
    %9 = vector.shape_cast %8 : vector<1x128x128xbf16> to vector<128x128xbf16>
    %cst = arith.constant dense<0.000000e+00> : vector<16x128xf32>
    %10 = tpu.matmul %7, %9, %cst {dimension_numbers = #tpu.dot_dimension_numbers<[1], [0], [0], [1], [0, 0, 1, 1], [], []>} : vector<16x128xbf16>, vector<128x128xbf16>, vector<16x128xf32> -> vector<16x128xf32>
    %c-1640531535_i32 = arith.constant -1640531535 : i32
    %11 = arith.xori %1, %c-1640531535_i32 : i32
    %c-1640531527_i32 = arith.constant -1640531527 : i32
    %12 = vector.broadcast %c-1640531527_i32 : i32 to vector<16x128xi32>
    %13 = arith.muli %4, %12 : vector<16x128xi32>
    %c-2048144789_i32 = arith.constant -2048144789 : i32
    %14 = vector.broadcast %c-2048144789_i32 : i32 to vector<16x128xi32>
    %15 = arith.muli %5, %14 : vector<16x128xi32>
    %16 = arith.xori %13, %15 : vector<16x128xi32>
    %17 = vector.broadcast %11 : i32 to vector<16x128xi32>
    %18 = arith.xori %16, %17 : vector<16x128xi32>
    %c16_i32_5 = arith.constant 16 : i32
    %19 = vector.broadcast %c16_i32_5 : i32 to vector<16x128xi32>
    %20 = arith.shrui %18, %19 : vector<16x128xi32>
    %21 = arith.xori %18, %20 : vector<16x128xi32>
    %c2146121005_i32 = arith.constant 2146121005 : i32
    %22 = vector.broadcast %c2146121005_i32 : i32 to vector<16x128xi32>
    %23 = arith.muli %21, %22 : vector<16x128xi32>
    %c15_i32 = arith.constant 15 : i32
    %24 = vector.broadcast %c15_i32 : i32 to vector<16x128xi32>
    %25 = arith.shrui %23, %24 : vector<16x128xi32>
    %26 = arith.xori %23, %25 : vector<16x128xi32>
    %c-2073254261_i32 = arith.constant -2073254261 : i32
    %27 = vector.broadcast %c-2073254261_i32 : i32 to vector<16x128xi32>
    %28 = arith.muli %26, %27 : vector<16x128xi32>
    %c16_i32_6 = arith.constant 16 : i32
    %29 = vector.broadcast %c16_i32_6 : i32 to vector<16x128xi32>
    %30 = arith.shrui %28, %29 : vector<16x128xi32>
    %31 = arith.xori %28, %30 : vector<16x128xi32>
    %c1_i32 = arith.constant 1 : i32
    %32 = vector.broadcast %c1_i32 : i32 to vector<16x128xi32>
    %33 = arith.andi %31, %32 : vector<16x128xi32>
    %c0_i32 = arith.constant 0 : i32
    %34 = vector.broadcast %c0_i32 : i32 to vector<16x128xi32>
    %35 = arith.cmpi eq, %33, %34 : vector<16x128xi32>
    %cst_7 = arith.constant 0.000000e+00 : f32
    %36 = vector.broadcast %cst_7 : f32 to vector<16x128xf32>
    %37 = arith.cmpf ogt, %10, %36 : vector<16x128xf32>
    %38 = arith.andi %35, %37 : vector<16x128xi1>
    %cst_8 = arith.constant 2.000000e+00 : f32
    %39 = vector.broadcast %cst_8 : f32 to vector<16x128xf32>
    %40 = arith.mulf %10, %39 : vector<16x128xf32>
    %cst_9 = arith.constant 0.000000e+00 : f32
    %41 = vector.broadcast %cst_9 : f32 to vector<16x128xf32>
    %42 = arith.select %38, %40, %41 : vector<16x128xi1>, vector<16x128xf32>
    %43 = arith.truncf %42 : vector<16x128xf32> to vector<16x128xbf16>
    %c1 = arith.constant 1 : index
    %c0_10 = arith.constant 0 : index
    %c0_11 = arith.constant 0 : index
    %44 = vector.load %arg3[%c1, %c0_10, %c0_11] : memref<2x128x128xbf16, #tpu.memory_space<vmem>>, vector<1x128x128xbf16>
    %45 = vector.shape_cast %44 : vector<1x128x128xbf16> to vector<128x128xbf16>
    %cst_12 = arith.constant dense<0.000000e+00> : vector<16x128xf32>
    %46 = tpu.matmul %43, %45, %cst_12 {dimension_numbers = #tpu.dot_dimension_numbers<[1], [0], [0], [1], [0, 0, 1, 1], [], []>} : vector<16x128xbf16>, vector<128x128xbf16>, vector<16x128xf32> -> vector<16x128xf32>
    %c1013904226_i32 = arith.constant 1013904226 : i32
    %47 = arith.xori %1, %c1013904226_i32 : i32
    %c-1640531527_i32_13 = arith.constant -1640531527 : i32
    %48 = vector.broadcast %c-1640531527_i32_13 : i32 to vector<16x128xi32>
    %49 = arith.muli %4, %48 : vector<16x128xi32>
    %c-2048144789_i32_14 = arith.constant -2048144789 : i32
    %50 = vector.broadcast %c-2048144789_i32_14 : i32 to vector<16x128xi32>
    %51 = arith.muli %5, %50 : vector<16x128xi32>
    %52 = arith.xori %49, %51 : vector<16x128xi32>
    %53 = vector.broadcast %47 : i32 to vector<16x128xi32>
    %54 = arith.xori %52, %53 : vector<16x128xi32>
    %c16_i32_15 = arith.constant 16 : i32
    %55 = vector.broadcast %c16_i32_15 : i32 to vector<16x128xi32>
    %56 = arith.shrui %54, %55 : vector<16x128xi32>
    %57 = arith.xori %54, %56 : vector<16x128xi32>
    %c2146121005_i32_16 = arith.constant 2146121005 : i32
    %58 = vector.broadcast %c2146121005_i32_16 : i32 to vector<16x128xi32>
    %59 = arith.muli %57, %58 : vector<16x128xi32>
    %c15_i32_17 = arith.constant 15 : i32
    %60 = vector.broadcast %c15_i32_17 : i32 to vector<16x128xi32>
    %61 = arith.shrui %59, %60 : vector<16x128xi32>
    %62 = arith.xori %59, %61 : vector<16x128xi32>
    %c-2073254261_i32_18 = arith.constant -2073254261 : i32
    %63 = vector.broadcast %c-2073254261_i32_18 : i32 to vector<16x128xi32>
    %64 = arith.muli %62, %63 : vector<16x128xi32>
    %c16_i32_19 = arith.constant 16 : i32
    %65 = vector.broadcast %c16_i32_19 : i32 to vector<16x128xi32>
    %66 = arith.shrui %64, %65 : vector<16x128xi32>
    %67 = arith.xori %64, %66 : vector<16x128xi32>
    %c1_i32_20 = arith.constant 1 : i32
    %68 = vector.broadcast %c1_i32_20 : i32 to vector<16x128xi32>
    %69 = arith.andi %67, %68 : vector<16x128xi32>
    %c0_i32_21 = arith.constant 0 : i32
    %70 = vector.broadcast %c0_i32_21 : i32 to vector<16x128xi32>
    %71 = arith.cmpi eq, %69, %70 : vector<16x128xi32>
    %cst_22 = arith.constant 0.000000e+00 : f32
    %72 = vector.broadcast %cst_22 : f32 to vector<16x128xf32>
    %73 = arith.cmpf ogt, %46, %72 : vector<16x128xf32>
    %74 = arith.andi %71, %73 : vector<16x128xi1>
    %cst_23 = arith.constant 2.000000e+00 : f32
    %75 = vector.broadcast %cst_23 : f32 to vector<16x128xf32>
    %76 = arith.mulf %46, %75 : vector<16x128xf32>
    %cst_24 = arith.constant 0.000000e+00 : f32
    %77 = vector.broadcast %cst_24 : f32 to vector<16x128xf32>
    %78 = arith.select %74, %76, %77 : vector<16x128xi1>, vector<16x128xf32>
    %c0_25 = arith.constant 0 : index
    %c0_26 = arith.constant 0 : index
    %79 = vector.load %arg4[%c0_25, %c0_26] : memref<16x128xf32, #tpu.memory_space<vmem>>, vector<16x128xf32>
    tpu.vector_store %arg4[%c0_25, %c0_26], %78 {strides = array<i32>} : memref<16x128xf32, #tpu.memory_space<vmem>>, vector<16x128xf32>,
    return
  }
  func.func @transform_0(%arg0: i32, %arg1: memref<1xi32, #tpu.memory_space<smem>>) -> (i32, i32) {
    %c0_i32 = arith.constant 0 : i32
    %c0_i32_0 = arith.constant 0 : i32
    return %arg0, %c0_i32 : i32, i32
  }
  func.func @transform_1(%arg0: i32, %arg1: memref<1xi32, #tpu.memory_space<smem>>) -> (i32, i32, i32) {
    %c0_i32 = arith.constant 0 : i32
    %c0_i32_0 = arith.constant 0 : i32
    %c0_i32_1 = arith.constant 0 : i32
    %c0_i32_2 = arith.constant 0 : i32
    return %c0_i32, %c0_i32_0, %c0_i32_1 : i32, i32, i32
  }
  func.func @transform_2(%arg0: i32, %arg1: memref<1xi32, #tpu.memory_space<smem>>) -> (i32, i32) {
    %c0_i32 = arith.constant 0 : i32
    %c0_i32_0 = arith.constant 0 : i32
    return %arg0, %c0_i32 : i32, i32
  }
}

</mosaic_0001>

<llo_original>
// kernel: tpu_custom_call.1
$region0: #{tpu_custom_call.1}
  #allocation0 [shape = 'u32[]', space=smem, size = 0x4, offset = 0x4, fixed_abs, tag = 'smem constant byte address 0x4 - core index']
  #allocation1 [shape = 'u32[144,128]{1,0:T(1,128)}', space=vmem, size = 0x12000, scoped, tag = 'internal scratch']
  #allocation2 [shape = 's32[1]{0}', space=sflag, size = 0x4, scoped, tag = 'scoped memory for tpu_custom_call.1']
  #allocation3 [shape = 's32[1]{0:T(128)S(6)}', space=smem, size = 0x200, scoped, tag = 'prefetched SMEM operand 0']
  %s0 = inlined_call_operand.<no memory space> [shape: s32[1], index: 0, kind: input, shape index: {}]
  %s1 = inlined_call_operand.hbm [shape: f32[16,128], index: 1, kind: input, shape index: {}]
  %s2 = inlined_call_operand.hbm [shape: bf16[2,128,128], index: 2, kind: input, shape index: {}]
  %s3 = inlined_call_operand.hbm [shape: f32[16,128], index: 3, kind: output, shape index: {}]
  %s4 = sld [smem:[#allocation0]]
  $region26: #{tpu_custom_call.1} parent=0
    _
  %s6 = ssub.s32 1, %s4
  %s7 = scalar_select 0, %s6, %s4
  %8 = sst [smem:[#allocation3]] %s0
  $region1: #{tpu_custom_call.1} parent=0
    #allocation4 [shape = 'u8[8192]{0}', space=vmem, size = 0x2000, scoped, tag = 'input window, operand 1, single buffered']
    #allocation5 [shape = 's32[1]{0}', space=sflag, size = 0x4, scoped, tag = 'scoped memory for tpu_custom_call.1']
    #allocation6 [shape = 's32[1]{0}', space=sflag, size = 0x4, scoped, tag = 'scoped memory for tpu_custom_call.1']
    #allocation7 [shape = 'u8[65536]{0}', space=vmem, size = 0x10000, scoped, tag = 'input window, operand 2, single buffered']
    #allocation8 [shape = 's32[1]{0}', space=sflag, size = 0x4, scoped, tag = 'scoped memory for tpu_custom_call.1']
    #allocation9 [shape = 'u8[8192]{0}', space=vmem, size = 0x2000, scoped, tag = 'output window, operand 0, single buffered']
    %9 = vsyncpa [#allocation5], 0
    %10 = vsyncpa [#allocation8], 0
    %11 = vsyncpa [#allocation6], 0
    // Predicated region
    $region2: #{tpu_custom_call.1} parent=1 // pred_check
      _
    $region3: #{tpu_custom_call.1} parent=1 // pred_check_branch
      %13 = sbr.rel (0) target = $region5
    $region4: #{tpu_custom_call.1} parent=1 // pred_region
      %s15 = ssub.s32 256, 256
      %16 = vsyncadd [#allocation5], %s15
      %s17 = sshll.u32 [#allocation4], 4
      %s18 = int_to_ptr.vmem [resolvable:$true] %s17
      %23 = dma.hbm_to_vmem [thread:$0]  %s1, 256, %s18, [#allocation5], 128, 128, 8
    $region5: #{tpu_custom_call.1} parent=1 // pred_fallthru
      _
    // Predicated region
    $region6: #{tpu_custom_call.1} parent=1 // pred_check
      _
    $region7: #{tpu_custom_call.1} parent=1 // pred_check_branch
      %25 = sbr.rel (0) target = $region9
    $region8: #{tpu_custom_call.1} parent=1 // pred_region
      %s27 = ssub.s32 2048, 2048
      %28 = vsyncadd [#allocation8], %s27
      %s29 = sshll.u32 [#allocation7], 4
      %s30 = int_to_ptr.vmem [resolvable:$true] %s29
      %35 = dma.hbm_to_vmem [thread:$0]  %s2, 2048, %s30, [#allocation8], 64, 64, 4
    $region9: #{tpu_custom_call.1} parent=1 // pred_fallthru
      _
    // Predicated region
    $region10: #{tpu_custom_call.1} parent=1 // pred_check
      _
    $region11: #{tpu_custom_call.1} parent=1 // pred_check_branch
      %37 = sbr.rel (0) target = $region13
    $region12: #{tpu_custom_call.1} parent=1 // pred_region
      %38 = dma.done [#allocation5], 256
    $region13: #{tpu_custom_call.1} parent=1 // pred_fallthru
      _
    // Predicated region
    $region14: #{tpu_custom_call.1} parent=1 // pred_check
      _
    $region15: #{tpu_custom_call.1} parent=1 // pred_check_branch
      %40 = sbr.rel (0) target = $region17
    $region16: #{tpu_custom_call.1} parent=1 // pred_region
      %41 = dma.done [#allocation8], 2048
    $region17: #{tpu_custom_call.1} parent=1 // pred_fallthru
      _
    %s43 = smul.u32 0, 16
    %s44 = sld [smem:[#allocation3]]
    %v45 = vlaneseq
    %v46 = vshrl.u32 %v45, 7
    %v47 = vadd.s32 %v46, 8
    %v48 = vstv %s43
    %v49 = vadd.s32 %v46, %v48
    %v50 = vadd.s32 %v47, %v48
    %v51 = vlaneseq
    %v52 = vand.u32 %v51, 127
    %v53 = vld [vmem:[#allocation4] sm:$0xff]
    %v54 = vld [vmem:[#allocation4 + $0x8] sm:$0xff]
    %v55 = vpack.c.bf16 %v54, %v53
    %v56 = vld [vmem:[#allocation7] sm:$0xf]
    %v57 = vld [vmem:[#allocation7 + $0x4] sm:$0xf]
    %v58 = vld [vmem:[#allocation7 + $0x8] sm:$0xf]
    %v59 = vld [vmem:[#allocation7 + $0xc] sm:$0xf]
    %v60 = vld [vmem:[#allocation7 + $0x10] sm:$0xf]
    %v61 = vld [vmem:[#allocation7 + $0x14] sm:$0xf]
    %v62 = vld [vmem:[#allocation7 + $0x18] sm:$0xf]
    %v63 = vld [vmem:[#allocation7 + $0x1c] sm:$0xf]
    %v64 = vld [vmem:[#allocation7 + $0x20] sm:$0xf]
    %v65 = vld [vmem:[#allocation7 + $0x24] sm:$0xf]
    %v66 = vld [vmem:[#allocation7 + $0x28] sm:$0xf]
    %v67 = vld [vmem:[#allocation7 + $0x2c] sm:$0xf]
    %v68 = vld [vmem:[#allocation7 + $0x30] sm:$0xf]
    %v69 = vld [vmem:[#allocation7 + $0x34] sm:$0xf]
    %v70 = vld [vmem:[#allocation7 + $0x38] sm:$0xf]
    %v71 = vld [vmem:[#allocation7 + $0x3c] sm:$0xf]
    %v88 = vunpack.c.l.b16 %v56
    %v89 = vunpack.c.l.b16 %v57
    %v90 = vunpack.c.l.b16 %v58
    %v91 = vunpack.c.l.b16 %v59
    %v92 = vunpack.c.l.b16 %v60
    %v93 = vunpack.c.l.b16 %v61
    %v94 = vunpack.c.l.b16 %v62
    %v95 = vunpack.c.l.b16 %v63
    %v96 = vunpack.c.l.b16 %v64
    %v97 = vunpack.c.l.b16 %v65
    %v98 = vunpack.c.l.b16 %v66
    %v99 = vunpack.c.l.b16 %v67
    %v100 = vunpack.c.l.b16 %v68
    %v101 = vunpack.c.l.b16 %v69
    %v102 = vunpack.c.l.b16 %v70
    %v103 = vunpack.c.l.b16 %v71
    %v104 = vpack.c.b16 %v89, %v88
    %v105 = vpack.c.b16 %v91, %v90
    %v106 = vpack.c.b16 %v93, %v92
    %v107 = vpack.c.b16 %v95, %v94
    %v108 = vpack.c.b16 %v97, %v96
    %v109 = vpack.c.b16 %v99, %v98
    %v110 = vpack.c.b16 %v101, %v100
    %v111 = vpack.c.b16 %v103, %v102
    %120 = vmatprep.subr.bf16.mxu0 0
    %121 = vmatpush1.bf16.msra.mxu0 %v104
    %122 = vmatprep.subr.bf16.mxu0 0
    %123 = vmatpush1.bf16.msra.mxu0 %v105
    %124 = vmatprep.subr.bf16.mxu0 0
    %125 = vmatpush1.bf16.msra.mxu0 %v106
    %126 = vmatprep.subr.bf16.mxu0 0
    %127 = vmatpush1.bf16.msra.mxu0 %v107
    %128 = vmatprep.subr.bf16.mxu0 0
    %129 = vmatpush1.bf16.msra.mxu0 %v108
    %130 = vmatprep.subr.bf16.mxu0 0
    %131 = vmatpush1.bf16.msra.mxu0 %v109
    %132 = vmatprep.subr.bf16.mxu0 0
    %133 = vmatpush1.bf16.msra.mxu0 %v110
    %134 = vmatprep.subr.bf16.mxu0 0
    %135 = vmatpush1.bf16.msra.mxu0 %v111
    %136 = vmatprep.subr.bf16.mxu0 0
    %137 = vmatpush1.bf16.msra.mxu0 0
    %138 = vmatprep.subr.bf16.mxu0 0
    %139 = vmatpush1.bf16.msra.mxu0 0
    %140 = vmatprep.subr.bf16.mxu0 0
    %141 = vmatpush1.bf16.msra.mxu0 0
    %142 = vmatprep.subr.bf16.mxu0 0
    %143 = vmatpush1.bf16.msra.mxu0 0
    %144 = vmatprep.subr.bf16.mxu0 0
    %145 = vmatpush1.bf16.msra.mxu0 0
    %146 = vmatprep.subr.bf16.mxu0 0
    %147 = vmatpush1.bf16.msra.mxu0 0
    %148 = vmatprep.subr.bf16.mxu0 0
    %149 = vmatpush1.bf16.msra.mxu0 0
    %150 = vmatprep.subr.bf16.mxu0 0
    %151 = vmatpush1.bf16.msra.mxu0 0
    %152 = vmatprep.mubr.bf16.mxu0 0
    %153 = vmatmul.mubr.bf16.gmra.mrb[0].mxu0 %v55
    %v154 = vpop.f32.mrb[0].mxu0
    %v155 = vadd.f32 0.0, %v154
    %v156 = vpop.f32.mrb[0].mxu0
    %v157 = vpop.f32.mrb[0].mxu0
    %v158 = vadd.f32 0.0, %v157
    %v159 = vpop.f32.mrb[0].mxu0
    %160 = vdwg.mxu0
    %s161 = sxor.u32 %s44, 2654435761
    %v162 = vmul.u32 %v49, 2654435769
    %v163 = vmul.u32 %v50, 2654435769
    %v164 = vmul.u32 %v52, 2246822507
    %v165 = vxor.u32 %v162, %v164
    %v166 = vxor.u32 %v163, %v164
    %v167 = vstv %s161
    %v168 = vxor.u32 %v165, %v167
    %v169 = vxor.u32 %v166, %v167
    %v170 = vshrl.u32 %v168, 16
    %v171 = vshrl.u32 %v169, 16
    %v172 = vxor.u32 %v168, %v170
    %v173 = vxor.u32 %v169, %v171
    %v174 = vmul.u32 %v172, 2146121005
    %v175 = vmul.u32 %v173, 2146121005
    %v176 = vshrl.u32 %v174, 15
    %v177 = vshrl.u32 %v175, 15
    %v178 = vxor.u32 %v174, %v176
    %v179 = vxor.u32 %v175, %v177
    %v180 = vmul.u32 %v178, 2221713035
    %v181 = vmul.u32 %v179, 2221713035
    %v182 = vshrl.u32 %v180, 16
    %v183 = vshrl.u32 %v181, 16
    %v184 = vxor.u32 %v180, %v182
    %v185 = vxor.u32 %v181, %v183
    %v186 = vand.u32 %v184, 1
    %v187 = vand.u32 %v185, 1
    %vm188 = vcmp.eq.s32.totalorder %v186, 0
    %vm189 = vcmp.eq.s32.totalorder %v187, 0
    %vm190 = vcmp.gt.f32.partialorder %v155, 0.0
    %vm191 = vcmp.gt.f32.partialorder %v158, 0.0
    %vm192 = vmand %vm188, %vm190
    %vm193 = vmand %vm189, %vm191
    %v194 = vmul.f32 %v155, 2.0
    %v195 = vmul.f32 %v158, 2.0
    %v196 = vsel %vm192, %v194, 0.0
    %v197 = vsel %vm193, %v195, 0.0
    %v198 = vpack.c.bf16 %v197, %v196
    %s199 = scalar_lea.vmem [#allocation7], 64
    %v200 = vld [vmem:[%s199] sm:$0xf]
    %v201 = vld [vmem:[%s199 + $0x4] sm:$0xf]
    %v202 = vld [vmem:[%s199 + $0x8] sm:$0xf]
    %v203 = vld [vmem:[%s199 + $0xc] sm:$0xf]
    %v204 = vld [vmem:[%s199 + $0x10] sm:$0xf]
    %v205 = vld [vmem:[%s199 + $0x14] sm:$0xf]
    %v206 = vld [vmem:[%s199 + $0x18] sm:$0xf]
    %v207 = vld [vmem:[%s199 + $0x1c] sm:$0xf]
    %v208 = vld [vmem:[%s199 + $0x20] sm:$0xf]
    %v209 = vld [vmem:[%s199 + $0x24] sm:$0xf]
    %v210 = vld [vmem:[%s199 + $0x28] sm:$0xf]
    %v211 = vld [vmem:[%s199 + $0x2c] sm:$0xf]
    %v212 = vld [vmem:[%s199 + $0x30] sm:$0xf]
    %v213 = vld [vmem:[%s199 + $0x34] sm:$0xf]
    %v214 = vld [vmem:[%s199 + $0x38] sm:$0xf]
    %v215 = vld [vmem:[%s199 + $0x3c] sm:$0xf]
    %v232 = vunpack.c.l.b16 %v200
    %v233 = vunpack.c.l.b16 %v201
    %v234 = vunpack.c.l.b16 %v202
    %v235 = vunpack.c.l.b16 %v203
    %v236 = vunpack.c.l.b16 %v204
    %v237 = vunpack.c.l.b16 %v205
    %v238 = vunpack.c.l.b16 %v206
    %v239 = vunpack.c.l.b16 %v207
    %v240 = vunpack.c.l.b16 %v208
    %v241 = vunpack.c.l.b16 %v209
    %v242 = vunpack.c.l.b16 %v210
    %v243 = vunpack.c.l.b16 %v211
    %v244 = vunpack.c.l.b16 %v212
    %v245 = vunpack.c.l.b16 %v213
    %v246 = vunpack.c.l.b16 %v214
    %v247 = vunpack.c.l.b16 %v215
    %v248 = vpack.c.b16 %v233, %v232
    %v249 = vpack.c.b16 %v235, %v234
    %v250 = vpack.c.b16 %v237, %v236
    %v251 = vpack.c.b16 %v239, %v238
    %v252 = vpack.c.b16 %v241, %v240
    %v253 = vpack.c.b16 %v243, %v242
    %v254 = vpack.c.b16 %v245, %v244
    %v255 = vpack.c.b16 %v247, %v246
    %264 = vmatprep.subr.bf16.mxu0 0
    %265 = vmatpush1.bf16.msra.mxu0 %v248
    %266 = vmatprep.subr.bf16.mxu0 0
    %267 = vmatpush1.bf16.msra.mxu0 %v249
    %268 = vmatprep.subr.bf16.mxu0 0
    %269 = vmatpush1.bf16.msra.mxu0 %v250
    %270 = vmatprep.subr.bf16.mxu0 0
    %271 = vmatpush1.bf16.msra.mxu0 %v251
    %272 = vmatprep.subr.bf16.mxu0 0
    %273 = vmatpush1.bf16.msra.mxu0 %v252
    %274 = vmatprep.subr.bf16.mxu0 0
    %275 = vmatpush1.bf16.msra.mxu0 %v253
    %276 = vmatprep.subr.bf16.mxu0 0
    %277 = vmatpush1.bf16.msra.mxu0 %v254
    %278 = vmatprep.subr.bf16.mxu0 0
    %279 = vmatpush1.bf16.msra.mxu0 %v255
    %280 = vmatprep.subr.bf16.mxu0 0
    %281 = vmatpush1.bf16.msra.mxu0 0
    %282 = vmatprep.subr.bf16.mxu0 0
    %283 = vmatpush1.bf16.msra.mxu0 0
    %284 = vmatprep.subr.bf16.mxu0 0
    %285 = vmatpush1.bf16.msra.mxu0 0
    %286 = vmatprep.subr.bf16.mxu0 0
    %287 = vmatpush1.bf16.msra.mxu0 0
    %288 = vmatprep.subr.bf16.mxu0 0
    %289 = vmatpush1.bf16.msra.mxu0 0
    %290 = vmatprep.subr.bf16.mxu0 0
    %291 = vmatpush1.bf16.msra.mxu0 0
    %292 = vmatprep.subr.bf16.mxu0 0
    %293 = vmatpush1.bf16.msra.mxu0 0
    %294 = vmatprep.subr.bf16.mxu0 0
    %295 = vmatpush1.bf16.msra.mxu0 0
    %296 = vmatprep.mubr.bf16.mxu0 0
    %297 = vmatmul.mubr.bf16.gmra.mrb[0].mxu0 %v198
    %v298 = vpop.f32.mrb[0].mxu0
    %v299 = vadd.f32 0.0, %v298
    %v300 = vpop.f32.mrb[0].mxu0
    %v301 = vpop.f32.mrb[0].mxu0
    %v302 = vadd.f32 0.0, %v301
    %v303 = vpop.f32.mrb[0].mxu0
    %304 = vdwg.mxu0
    %s305 = sxor.u32 %s44, 1013904226
    %v306 = vstv %s305
    %v307 = vxor.u32 %v165, %v306
    %v308 = vxor.u32 %v166, %v306
    %v309 = vshrl.u32 %v307, 16
    %v310 = vshrl.u32 %v308, 16
    %v311 = vxor.u32 %v307, %v309
    %v312 = vxor.u32 %v308, %v310
    %v313 = vmul.u32 %v311, 2146121005
    %v314 = vmul.u32 %v312, 2146121005
    %v315 = vshrl.u32 %v313, 15
    %v316 = vshrl.u32 %v314, 15
    %v317 = vxor.u32 %v313, %v315
    %v318 = vxor.u32 %v314, %v316
    %v319 = vmul.u32 %v317, 2221713035
    %v320 = vmul.u32 %v318, 2221713035
    %v321 = vshrl.u32 %v319, 16
    %v322 = vshrl.u32 %v320, 16
    %v323 = vxor.u32 %v319, %v321
    %v324 = vxor.u32 %v320, %v322
    %v325 = vand.u32 %v323, 1
    %v326 = vand.u32 %v324, 1
    %vm327 = vcmp.eq.s32.totalorder %v325, 0
    %vm328 = vcmp.eq.s32.totalorder %v326, 0
    %vm329 = vcmp.gt.f32.partialorder %v299, 0.0
    %vm330 = vcmp.gt.f32.partialorder %v302, 0.0
    %vm331 = vmand %vm327, %vm329
    %vm332 = vmand %vm328, %vm330
    %v333 = vmul.f32 %v299, 2.0
    %v334 = vmul.f32 %v302, 2.0
    %v335 = vsel %vm331, %v333, 0.0
    %v336 = vsel %vm332, %v334, 0.0
    %337 = vst [vmem:[#allocation9] sm:$0xff] %v335
    %338 = vst [vmem:[#allocation9 + $0x8] sm:$0xff] %v336
    // Predicated region
    $region18: #{tpu_custom_call.1} parent=1 // pred_check
      _
    $region19: #{tpu_custom_call.1} parent=1 // pred_check_branch
      %340 = sbr.rel (0) target = $region21
    $region20: #{tpu_custom_call.1} parent=1 // pred_region
      %s342 = ssub.s32 256, 256
      %343 = vsyncadd [#allocation6], %s342
      %s344 = sshll.u32 [#allocation9], 4
      %s345 = int_to_ptr.vmem [resolvable:$true] %s344
      %350 = dma.vmem_to_hbm [thread:$0]  %s345, 256, %s3, [#allocation6], 128, 128, 8
    $region21: #{tpu_custom_call.1} parent=1 // pred_fallthru
      _
    // Predicated region
    $region22: #{tpu_custom_call.1} parent=1 // pred_check
      _
    $region23: #{tpu_custom_call.1} parent=1 // pred_check_branch
      %352 = sbr.rel (0) target = $region25
    $region24: #{tpu_custom_call.1} parent=1 // pred_region
      %353 = dma.done [#allocation6], 256
    $region25: #{tpu_custom_call.1} parent=1 // pred_fallthru
      _
    %354 = vsyncpa [#allocation5], 1
    %355 = vsyncpa [#allocation8], 1
    %356 = vsyncpa [#allocation6], 1

</llo_original>
